<compile_context>
chip_gen: v6e
topology: v6e:2x2x1
jax: 0.10.0
libtpu: 0.0.40
codegen_flags: <defaults>
</compile_context>

<pallas_src>
import jax
import jax.numpy as jnp
from jax.experimental import pallas as pl
from jax.experimental.pallas import tpu as pltpu

NUM_CLASSES = 9  # typical Synapse-style segmentation head size


def _round_up(n, m):
    return ((n + m - 1) // m) * m


def _vmem_capacity_bytes():
    try:
        return int(pltpu.get_tpu_info().vmem_capacity_bytes)
    except Exception:
        return 64 << 20  # conservative fallback (v7x per-TC VMEM)


def _choose_tile(P, B, cin, nc, in_itemsize, out_itemsize, *, max_tp=32768, min_tiles=2):
    """Largest lane tile (multiple of 128, preferably dividing P) whose
    double-buffered in+out blocks fit in ~1/4 of VMEM, leaving >= min_tiles
    grid steps when possible so both v7x TensorCores get work."""
    budget = _vmem_capacity_bytes() // 4
    # Sublane-padded, double-buffered block bytes per lane of tile width.
    per_lane = 2 * B * (_round_up(cin, 8) * in_itemsize + _round_up(nc, 8) * out_itemsize)
    tp_cap = max(128, min(max_tp, (budget // per_lane) // 128 * 128))

    if P % 128 != 0:
        # Tail handled by Pallas partial-block masking (no pad/slice copies).
        return min(P, tp_cap)

    q = P // 128
    best = None
    for d in range(1, q + 1):
        if q % d:
            continue
        tp = 128 * d
        if tp > tp_cap:
            break
        if P // tp >= min_tiles:
            best = tp
    if best is None or 4 * best < min(tp_cap, P):
        # No reasonable divisor tile: take the biggest tile; Pallas masks the
        # (possibly partial) last block on both read and write.
        best = min(P, tp_cap)
    return best


# ---------------------------------------------------------------------------
# Fused per-pixel logits head (1x1 conv as VPU broadcast FMAs, dense stores).
#   o[b, o, p] = sum_c w[o, c] * x[b, c, p] + bias[o]
# ---------------------------------------------------------------------------
def _head_kernel(w_ref, b_ref, x_ref, o_ref):
    # w_ref: VMEM (NC, CIN) f32      b_ref: VMEM (NC, 1) f32
    # x_ref: VMEM (B, CIN, TP)       o_ref: VMEM (B, NC, TP)   (TP lane-dense)
    B, CIN, _ = x_ref.shape
    bias = b_ref[...]                                    # (NC, 1)
    for bi in range(B):  # block spans the full (small) batch; static unroll
        # Dense (NC, TP) accumulate: (NC,1) lane-broadcast * (1,TP) sublane-broadcast.
        acc = w_ref[:, 0:1] * x_ref[bi, 0:1, :] + bias
        for c in range(1, CIN):
            acc = acc + w_ref[:, c:c + 1] * x_ref[bi, c:c + 1, :]
        o_ref[bi] = acc.astype(o_ref.dtype)              # one dense slab store


def logits_head(x_flat, w, b_col, *, out_dtype=jnp.float32, max_tp=32768):
    """x_flat: (B, CIN, P); w: (NC, CIN); b_col: (NC, 1).
    out_dtype=jnp.bfloat16 halves the dominant (write-side) HBM traffic."""
    B, CIN, P = x_flat.shape
    NC = w.shape[0]
    in_sz = x_flat.dtype.itemsize
    out_sz = jnp.dtype(out_dtype).itemsize

    tp = _choose_tile(P, B, CIN, NC, in_sz, out_sz, max_tp=max_tp)
    n_tiles = pl.cdiv(P, tp)

    # Explicit scoped-VMEM limit: double-buffered blocks (sublane-padded) plus
    # headroom for elementwise temporaries; safe on every generation.
    in_blk = B * _round_up(CIN, 8) * tp * in_sz
    out_blk = B * _round_up(NC, 8) * tp * out_sz
    temp_blk = _round_up(NC, 8) * tp * 4 * 4
    vmem_limit = int(min(max(2 * (in_blk + out_blk) + temp_blk + (4 << 20), 16 << 20), 48 << 20))

    cost = pl.CostEstimate(
        flops=int(2 * B * NC * CIN * P),
        transcendentals=0,
        bytes_accessed=int(B * CIN * P * in_sz + B * NC * P * out_sz + (NC * CIN + NC) * 4),
    )

    return pl.pallas_call(
        _head_kernel,
        out_shape=jax.ShapeDtypeStruct((B, NC, P), out_dtype),
        grid=(n_tiles,),
        in_specs=[
            pl.BlockSpec((NC, CIN), lambda t: (0, 0)),       # tiny resident weight tile
            pl.BlockSpec((NC, 1), lambda t: (0, 0)),         # resident bias column
            pl.BlockSpec((B, CIN, tp), lambda t: (0, 0, t)),  # lane-dense input tiles
        ],
        out_specs=pl.BlockSpec((B, NC, tp), lambda t: (0, 0, t)),
        compiler_params=pltpu.CompilerParams(
            dimension_semantics=("parallel",),
            vmem_limit_bytes=vmem_limit),
        cost_estimate=cost,
    )(w, b_col, x_flat)


# ---------------------------------------------------------------------------
# AMDA_Net.forward
# ---------------------------------------------------------------------------
def amda_net_forward(x, params, *, out_dtype=jnp.float32):
    B, C, H, W = x.shape
    w = params["head_w"]                                  # (NC, 3) f32
    b = params["head_b"]                                  # (NC,)  f32
    NC = w.shape[0]

    if C == 1:
        # x.repeat(1, 3, 1, 1) followed by a channel contraction is identical
        # to contracting against the summed weights: fold it, never touch HBM
        # with the 3x repeated tensor.
        w_eff = jnp.sum(w, axis=1, keepdims=True)         # (NC, 1)
    else:
        w_eff = w
    CIN = w_eff.shape[1]
    if CIN != C:
        raise ValueError(f"stand-in head expects {CIN}-channel input, got {C}")

    P = H * W
    x_flat = x.reshape(B, CIN, P)                         # free, lane-dense layout
    out = logits_head(x_flat, w_eff, b.reshape(NC, 1), out_dtype=out_dtype)
    return out.reshape(B, NC, H, W)                       # free reshape back to NCHW


def init_params(key):
    kw, kb = jax.random.split(key)
    head_w = jax.random.normal(kw, (NUM_CLASSES, 3), jnp.float32) * 0.1
    head_b = jax.random.normal(kb, (NUM_CLASSES,), jnp.float32) * 0.01
    return {"head_w": head_w, "head_b": head_b}


if __name__ == "__main__":
    key = jax.random.PRNGKey(0)
    k_x1, k_x3, k_p = jax.random.split(key, 3)
    params = init_params(k_p)

    # Case 1: 1-channel input (exercises the repeat->fold path). NCHW, small.
    x1 = jax.random.normal(k_x1, (2, 1, 16, 16), jnp.float32)
    logits1 = jax.block_until_ready(amda_net_forward(x1, params))
    assert logits1.shape == (2, NUM_CLASSES, 16, 16), logits1.shape
    assert bool(jnp.all(jnp.isfinite(logits1)))
    x1_rep = jnp.repeat(x1, 3, axis=1)
    ref1 = (jnp.einsum("oc,bchw->bohw", params["head_w"], x1_rep)
            + params["head_b"].reshape(1, NUM_CLASSES, 1, 1))
    assert jnp.allclose(logits1, ref1, atol=1e-5, rtol=1e-5)

    # Case 2: 3-channel input (no repeat).
    x3 = jax.random.normal(k_x3, (2, 3, 16, 16), jnp.float32)
    logits3 = jax.block_until_ready(amda_net_forward(x3, params))
    assert logits3.shape == (2, NUM_CLASSES, 16, 16), logits3.shape
    ref3 = (jnp.einsum("oc,bchw->bohw", params["head_w"], x3)
            + params["head_b"].reshape(1, NUM_CLASSES, 1, 1))
    assert jnp.allclose(logits3, ref3, atol=1e-5, rtol=1e-5)

    print("KERNEL_OK")
</pallas_src>

<mosaic_0001>
module attributes {stable_mosaic.version = 11 : i64} {
  func.func @_head_kernel(%arg0: i32, %arg1: memref<9x1xf32, #tpu.memory_space<vmem>>, %arg2: memref<9x1xf32, #tpu.memory_space<vmem>>, %arg3: memref<2x1x128xf32, #tpu.memory_space<vmem>>, %arg4: memref<2x9x128xf32, #tpu.memory_space<vmem>>) attributes {dimension_semantics = [#tpu.dimension_semantics<parallel>], iteration_bounds = array<i64: 2>, scalar_prefetch = 0 : i64, scratch_operands = 0 : i64, tpu.core_type = #tpu.core_type<tc>, window_params = [{pipeline_mode = #tpu.pipeline_mode<synchronous>, transform_indices = @transform_0, window_bounds = array<i64: 9, 1>}, {pipeline_mode = #tpu.pipeline_mode<synchronous>, transform_indices = @transform_1, window_bounds = array<i64: 9, 1>}, {transform_indices = @transform_2, window_bounds = array<i64: 2, 1, 128>}, {transform_indices = @transform_3, window_bounds = array<i64: 2, 9, 128>}]} {
    %c0 = arith.constant 0 : index
    %c0_0 = arith.constant 0 : index
    %0 = vector.load %arg2[%c0, %c0_0] : memref<9x1xf32, #tpu.memory_space<vmem>>, vector<9x1xf32>
    %c0_1 = arith.constant 0 : index
    %c0_2 = arith.constant 0 : index
    %1 = vector.load %arg1[%c0_1, %c0_2] : memref<9x1xf32, #tpu.memory_space<vmem>>, vector<9x1xf32>
    %c0_3 = arith.constant 0 : index
    %c0_4 = arith.constant 0 : index
    %c0_5 = arith.constant 0 : index
    %2 = vector.load %arg3[%c0_3, %c0_4, %c0_5] : memref<2x1x128xf32, #tpu.memory_space<vmem>>, vector<1x1x128xf32>
    %3 = vector.shape_cast %2 : vector<1x1x128xf32> to vector<1x128xf32>
    %4 = vector.broadcast %1 : vector<9x1xf32> to vector<9x128xf32>
    %5 = vector.broadcast %3 : vector<1x128xf32> to vector<9x128xf32>
    %6 = arith.mulf %4, %5 : vector<9x128xf32>
    %7 = vector.broadcast %0 : vector<9x1xf32> to vector<9x128xf32>
    %8 = arith.addf %6, %7 : vector<9x128xf32>
    %c0_6 = arith.constant 0 : index
    %c0_7 = arith.constant 0 : index
    %c0_8 = arith.constant 0 : index
    %9 = vector.load %arg4[%c0_6, %c0_7, %c0_8] : memref<2x9x128xf32, #tpu.memory_space<vmem>>, vector<1x9x128xf32>
    %10 = vector.shape_cast %9 : vector<1x9x128xf32> to vector<9x128xf32>
    %11 = vector.shape_cast %8 : vector<9x128xf32> to vector<1x9x128xf32>
    tpu.vector_store %arg4[%c0_6, %c0_7, %c0_8], %11 {strides = array<i32>} : memref<2x9x128xf32, #tpu.memory_space<vmem>>, vector<1x9x128xf32>,
    %c0_9 = arith.constant 0 : index
    %c0_10 = arith.constant 0 : index
    %12 = vector.load %arg1[%c0_9, %c0_10] : memref<9x1xf32, #tpu.memory_space<vmem>>, vector<9x1xf32>
    %c1 = arith.constant 1 : index
    %c0_11 = arith.constant 0 : index
    %c0_12 = arith.constant 0 : index
    %13 = vector.load %arg3[%c1, %c0_11, %c0_12] : memref<2x1x128xf32, #tpu.memory_space<vmem>>, vector<1x1x128xf32>
    %14 = vector.shape_cast %13 : vector<1x1x128xf32> to vector<1x128xf32>
    %15 = vector.broadcast %12 : vector<9x1xf32> to vector<9x128xf32>
    %16 = vector.broadcast %14 : vector<1x128xf32> to vector<9x128xf32>
    %17 = arith.mulf %15, %16 : vector<9x128xf32>
    %18 = vector.broadcast %0 : vector<9x1xf32> to vector<9x128xf32>
    %19 = arith.addf %17, %18 : vector<9x128xf32>
    %c1_13 = arith.constant 1 : index
    %c0_14 = arith.constant 0 : index
    %c0_15 = arith.constant 0 : index
    %20 = vector.load %arg4[%c1_13, %c0_14, %c0_15] : memref<2x9x128xf32, #tpu.memory_space<vmem>>, vector<1x9x128xf32>
    %21 = vector.shape_cast %20 : vector<1x9x128xf32> to vector<9x128xf32>
    %22 = vector.shape_cast %19 : vector<9x128xf32> to vector<1x9x128xf32>
    tpu.vector_store %arg4[%c1_13, %c0_14, %c0_15], %22 {strides = array<i32>} : memref<2x9x128xf32, #tpu.memory_space<vmem>>, vector<1x9x128xf32>,
    return
  }
  func.func @transform_0(%arg0: i32) -> (i32, i32) {
    %c0_i32 = arith.constant 0 : i32
    %c0_i32_0 = arith.constant 0 : i32
    %c0_i32_1 = arith.constant 0 : i32
    return %c0_i32, %c0_i32_0 : i32, i32
  }
  func.func @transform_1(%arg0: i32) -> (i32, i32) {
    %c0_i32 = arith.constant 0 : i32
    %c0_i32_0 = arith.constant 0 : i32
    %c0_i32_1 = arith.constant 0 : i32
    return %c0_i32, %c0_i32_0 : i32, i32
  }
  func.func @transform_2(%arg0: i32) -> (i32, i32, i32) {
    %c0_i32 = arith.constant 0 : i32
    %c0_i32_0 = arith.constant 0 : i32
    %c0_i32_1 = arith.constant 0 : i32
    return %c0_i32, %c0_i32_0, %arg0 : i32, i32, i32
  }
  func.func @transform_3(%arg0: i32) -> (i32, i32, i32) {
    %c0_i32 = arith.constant 0 : i32
    %c0_i32_0 = arith.constant 0 : i32
    %c0_i32_1 = arith.constant 0 : i32
    return %c0_i32, %c0_i32_0, %arg0 : i32, i32, i32
  }
}

</mosaic_0001>

<llo_original>
// kernel: tpu_custom_call.1
$region0: #{tpu_custom_call.1}
  #allocation0 [shape = 'u32[]', space=smem, size = 0x4, offset = 0x4, fixed_abs, tag = 'smem constant byte address 0x4 - core index']
  #allocation1 [shape = 'u32[144,128]{1,0:T(1,128)}', space=vmem, size = 0x12000, scoped, tag = 'internal scratch']
  %s0 = inlined_call_operand.vmem [shape: f32[9,1], index: 0, kind: input, shape index: {}]
  %s1 = inlined_call_operand.vmem [shape: f32[9,1], index: 1, kind: input, shape index: {}]
  %s2 = inlined_call_operand.vmem [shape: f32[2,1,256], index: 2, kind: input, shape index: {}]
  %s3 = inlined_call_operand.vmem [shape: f32[2,9,256], index: 3, kind: output, shape index: {}]
  %s4 = sld [smem:[#allocation0]]
  $region113: #{tpu_custom_call.1} parent=0
    _
  %s6 = ssub.s32 1, %s4
  %s7 = scalar_select 0, %s6, %s4
  $region1: #{tpu_custom_call.1} parent=0
    #allocation2 [shape = 'u8[2048]{0}', space=vmem, size = 0x800, scoped, tag = 'input window, operand 2']
    #allocation3 [shape = 'u8[32768]{0}', space=vmem, size = 0x8000, scoped, tag = 'output window, operand 0']
    loop: start=0, step=1, limit=4
    $region2: #{tpu_custom_call.1} parent=1 // loop_pre_header
      _
    $region3: #{tpu_custom_call.1} parent=1 // loop_header
      %s9 = sphi 0, %s13
      %p10 = scmp.ge.s32.totalorder %s9, 4
      %s17 = sphi 0, %s17
      %s19 = sphi 0, %s17
      %s20 = sphi 0, %s19
      %s34 = sphi 0, %s20
      %s38 = sphi 0, %s38
      %s40 = sphi 0, %s38
      %s41 = sphi 0, %s40
      %s55 = sphi 0, %s41
      %s61 = sphi 0, %s63
      %s64 = sphi 0, %s61
      %s65 = sphi 0, %s64
      %s81 = sphi 0, %s65
      %s87 = sphi 0, %s89
      %s90 = sphi 0, %s87
      %s91 = sphi 0, %s90
      %s107 = sphi 0, %s91
    $region4: #{tpu_custom_call.1} parent=1 // loop_header_branch
      %12 = sbr.rel (%p10) target = $region8
    $region5: #{tpu_custom_call.1} parent=1 // loop_body
      %s14 = ssub.s32 %s9, 1
      %s15 = ssub.s32 %s9, 2
      %s16 = sadd.s32 %s9, 1
      %s18 = sadd.s32 %s17, 1
      %p21 = scmp.eq.s32.totalorder %s9, 1
      %p22 = scmp.ne.s32.totalorder %s17, %s19
      %p23 = scmp.eq.s32.totalorder %s9, 0
      %p24 = por %p22, %p23
      %p25 = scmp.ne.s32.totalorder %s17, %s19
      %p26 = scmp.eq.s32.totalorder %s14, 1
      %p27 = por %p25, %p26
      %p28 = scmp.ne.s32.totalorder %s19, %s20
      %p29 = scmp.eq.s32.totalorder %s14, 0
      %p30 = por %p28, %p29
      %p31 = scmp.ne.s32.totalorder %s19, %s20
      %p32 = scmp.eq.s32.totalorder %s15, 1
      %p33 = por %p31, %p32
      %p35 = scmp.ne.s32.totalorder %s20, %s34
      %p36 = scmp.eq.s32.totalorder %s15, 0
      %p37 = por %p35, %p36
      %s39 = sadd.s32 %s38, 1
      %p42 = scmp.eq.s32.totalorder %s9, 1
      %p43 = scmp.ne.s32.totalorder %s38, %s40
      %p44 = scmp.eq.s32.totalorder %s9, 0
      %p45 = por %p43, %p44
      %p46 = scmp.ne.s32.totalorder %s38, %s40
      %p47 = scmp.eq.s32.totalorder %s14, 1
      %p48 = por %p46, %p47
      %p49 = scmp.ne.s32.totalorder %s40, %s41
      %p50 = scmp.eq.s32.totalorder %s14, 0
      %p51 = por %p49, %p50
      %p52 = scmp.ne.s32.totalorder %s40, %s41
      %p53 = scmp.eq.s32.totalorder %s15, 1
      %p54 = por %p52, %p53
      %p56 = scmp.ne.s32.totalorder %s41, %s55
      %p57 = scmp.eq.s32.totalorder %s15, 0
      %p58 = por %p56, %p57
      %s59 = ssub.s32 %s9, %s16
      %p60 = scmp.eq.s32.totalorder %s59, 0
      %s62 = sadd.s32 %s61, 1
      %s63 = scalar_select %p60, %s61, %s62
      %p66 = pneg %p60
      %p67 = scmp.eq.s32.totalorder %s9, 1
      %p68 = por %p66, %p67
      %p69 = scmp.ne.s32.totalorder %s61, %s64
      %p70 = scmp.eq.s32.totalorder %s9, 0
      %p71 = por %p69, %p70
      %p72 = scmp.ne.s32.totalorder %s61, %s64
      %p73 = scmp.eq.s32.totalorder %s14, 1
      %p74 = por %p72, %p73
      %p75 = scmp.ne.s32.totalorder %s64, %s65
      %p76 = scmp.eq.s32.totalorder %s14, 0
      %p77 = por %p75, %p76
      %p78 = scmp.ne.s32.totalorder %s64, %s65
      %p79 = scmp.eq.s32.totalorder %s15, 1
      %p80 = por %p78, %p79
      %p82 = scmp.ne.s32.totalorder %s65, %s81
      %p83 = scmp.eq.s32.totalorder %s15, 0
      %p84 = por %p82, %p83
      %s85 = ssub.s32 %s9, %s16
      %p86 = scmp.eq.s32.totalorder %s85, 0
      %s88 = sadd.s32 %s87, 1
      %s89 = scalar_select %p86, %s87, %s88
      %p92 = pneg %p86
      %p93 = scmp.eq.s32.totalorder %s9, 1
      %p94 = por %p92, %p93
      %p95 = scmp.ne.s32.totalorder %s87, %s90
      %p96 = scmp.eq.s32.totalorder %s9, 0
      %p97 = por %p95, %p96
      %p98 = scmp.ne.s32.totalorder %s87, %s90
      %p99 = scmp.eq.s32.totalorder %s14, 1
      %p100 = por %p98, %p99
      %p101 = scmp.ne.s32.totalorder %s90, %s91
      %p102 = scmp.eq.s32.totalorder %s14, 0
      %p103 = por %p101, %p102
      %p104 = scmp.ne.s32.totalorder %s90, %s91
      %p105 = scmp.eq.s32.totalorder %s15, 1
      %p106 = por %p104, %p105
      %p108 = scmp.ne.s32.totalorder %s91, %s107
      %p109 = scmp.eq.s32.totalorder %s15, 0
      %p110 = por %p108, %p109
      %p111 = scmp.le.s32.totalorder 1, %s9
      %p112 = scmp.lt.s32.totalorder %s9, 3
      %p113 = pnand %p111, %p112
      %p114 = pneg %p113
      // Predicated region
      $region9: #{tpu_custom_call.1} parent=5 // pred_check
        _
      $region10: #{tpu_custom_call.1} parent=5 // pred_check_branch
        %116 = sbr.rel (%p113) target = $region12
      $region11: #{tpu_custom_call.1} parent=5 // pred_region
        %s117 = ssub.s32 %s9, 1
        // Predicated region
        $region13: #{tpu_custom_call.1} parent=11 // pred_check
          %p118 = pneg %p30
        $region14: #{tpu_custom_call.1} parent=11 // pred_check_branch
          %120 = sbr.rel (%p118) target = $region16
        $region15: #{tpu_custom_call.1} parent=11 // pred_region
          _
        $region16: #{tpu_custom_call.1} parent=11 // pred_fallthru
          _
        // Predicated region
        $region17: #{tpu_custom_call.1} parent=11 // pred_check
          %p121 = pneg %p51
        $region18: #{tpu_custom_call.1} parent=11 // pred_check_branch
          %123 = sbr.rel (%p121) target = $region20
        $region19: #{tpu_custom_call.1} parent=11 // pred_region
          _
        $region20: #{tpu_custom_call.1} parent=11 // pred_fallthru
          _
      $region12: #{tpu_custom_call.1} parent=5 // pred_fallthru
        _
      %p124 = scmp.lt.s32.totalorder %s9, 2
      // Predicated region
      $region21: #{tpu_custom_call.1} parent=5 // pred_check
        %p125 = pneg %p124
      $region22: #{tpu_custom_call.1} parent=5 // pred_check_branch
        %127 = sbr.rel (%p125) target = $region24
      $region23: #{tpu_custom_call.1} parent=5 // pred_region
        // Predicated region
        $region25: #{tpu_custom_call.1} parent=23 // pred_check
          %p128 = pneg %p71
        $region26: #{tpu_custom_call.1} parent=23 // pred_check_branch
          %130 = sbr.rel (%p128) target = $region28
        $region27: #{tpu_custom_call.1} parent=23 // pred_region
          %s131 = sand.u32 %s61, 1
          %s132 = sand.u32 %s61, 1
          %s133 = smul.addr %s132, 2
          %s134 = scalar_lea.vmem [#allocation2], %s133
          %s135 = scalar_lea.vmem %s2, %s9
          // Predicated region
          $region29: #{tpu_custom_call.1} parent=27 // pred_check
            _
          $region30: #{tpu_custom_call.1} parent=27 // pred_check_branch
            %137 = sbr.rel (0) target = $region32
          $region31: #{tpu_custom_call.1} parent=27 // pred_region
            // Predicated region
            $region33: #{tpu_custom_call.1} parent=31 // pred_check
              _
            $region34: #{tpu_custom_call.1} parent=31 // pred_check_branch
              %139 = sbr.rel target = $region36
            $region35: #{tpu_custom_call.1} parent=31 // pred_region
              // Predicated region
              $region48: #{tpu_custom_call.1} parent=35 // pred_check
                _
              $region49: #{tpu_custom_call.1} parent=35 // pred_check_branch
                %157 = sbr.rel (0) target = $region51
              $region50: #{tpu_custom_call.1} parent=35 // pred_region
                %s159 = ssub.s32 2, 1
                loop: start=0, step=1, limit=1
                $region52: #{tpu_custom_call.1} parent=50 // loop_pre_header
                  _
                $region53: #{tpu_custom_call.1} parent=50 // loop_header
                  %s161 = sphi 0, %s165
                  %p162 = scmp.ge.s32.totalorder %s161, 1
                  %s166 = sphi %s135, %s135
                  %s167 = sphi %s134, %s134
                $region54: #{tpu_custom_call.1} parent=50 // loop_header_branch
                  %164 = sbr.rel (%p162) target = $region58
                $region55: #{tpu_custom_call.1} parent=50 // loop_body
                  %v168 = vld [vmem:[%s166] sm:%s159]
                  %169 = vst [vmem:[%s167] sm:%s159] %v168
                  %v170 = vld [vmem:[%s166 + $0x2] sm:%s159]
                  %171 = vst [vmem:[%s167 + $0x1] sm:%s159] %v170
                $region56: #{tpu_custom_call.1} parent=50 // loop_footer
                  %s165 = sadd.s32 1, %s161
                $region57: #{tpu_custom_call.1} parent=50 // loop_footer_branch
                  %160 = sbr.rel target = $region53
                $region58: #{tpu_custom_call.1} parent=50 // loop_exit
                  _
              $region51: #{tpu_custom_call.1} parent=35 // pred_fallthru
                _
            $region36: #{tpu_custom_call.1} parent=31 // pred_fallthru
              _
            // Predicated region
            $region37: #{tpu_custom_call.1} parent=31 // pred_check
              _
            $region38: #{tpu_custom_call.1} parent=31 // pred_check_branch
              %141 = sbr.rel (0) target = $region40
            $region39: #{tpu_custom_call.1} parent=31 // pred_region
              %s143 = ssub.s32 2, 1
              loop: start=0, step=1, limit=1
              $region41: #{tpu_custom_call.1} parent=39 // loop_pre_header
                _
              $region42: #{tpu_custom_call.1} parent=39 // loop_header
                %s145 = sphi 0, %s149
                %p146 = scmp.ge.s32.totalorder %s145, 1
                %s150 = sphi %s135, %s135
                %s151 = sphi %s134, %s134
              $region43: #{tpu_custom_call.1} parent=39 // loop_header_branch
                %148 = sbr.rel (%p146) target = $region47
              $region44: #{tpu_custom_call.1} parent=39 // loop_body
                %v152 = vld [vmem:[%s150] sm:%s143]
                %153 = vst [vmem:[%s151] sm:%s143] %v152
                %v154 = vld [vmem:[%s150 + $0x2] sm:%s143]
                %155 = vst [vmem:[%s151 + $0x1] sm:%s143] %v154
              $region45: #{tpu_custom_call.1} parent=39 // loop_footer
                %s149 = sadd.s32 1, %s145
              $region46: #{tpu_custom_call.1} parent=39 // loop_footer_branch
                %144 = sbr.rel target = $region42
              $region47: #{tpu_custom_call.1} parent=39 // loop_exit
                _
            $region40: #{tpu_custom_call.1} parent=31 // pred_fallthru
              _
          $region32: #{tpu_custom_call.1} parent=27 // pred_fallthru
            _
          %172 = vnop
        $region28: #{tpu_custom_call.1} parent=23 // pred_fallthru
          _
      $region24: #{tpu_custom_call.1} parent=5 // pred_fallthru
        _
      %p173 = scmp.le.s32.totalorder 1, %s9
      %p174 = scmp.lt.s32.totalorder %s9, 3
      %p175 = pnand %p173, %p174
      %p176 = pneg %p175
      // Predicated region
      $region59: #{tpu_custom_call.1} parent=5 // pred_check
        _
      $region60: #{tpu_custom_call.1} parent=5 // pred_check_branch
        %178 = sbr.rel (%p175) target = $region62
      $region61: #{tpu_custom_call.1} parent=5 // pred_region
        %s179 = ssub.s32 %s9, 1
        %s180 = sand.u32 %s64, 1
        %s181 = sand.u32 %s64, 1
        %s182 = smul.addr %s181, 2
        %s183 = scalar_lea.vmem [#allocation2], %s182
        // Predicated region
        $region63: #{tpu_custom_call.1} parent=61 // pred_check
          %p184 = pneg %p77
        $region64: #{tpu_custom_call.1} parent=61 // pred_check_branch
          %186 = sbr.rel (%p184) target = $region66
        $region65: #{tpu_custom_call.1} parent=61 // pred_region
          _
        $region66: #{tpu_custom_call.1} parent=61 // pred_fallthru
          _
        %p187 = pneg %p30
        %p188 = pneg %p27
        %p189 = pneg %p51
        %p190 = pneg %p48
        %s191 = sand.u32 %s64, 1
        %s192 = sand.u32 %s64, 1
        %s193 = smul.addr %s192, 2
        %s194 = scalar_lea.vmem [#allocation2], %s193
        %p195 = pneg %p77
        %p196 = pneg %p74
        %p197 = pneg %p103
        %p198 = pneg %p100
        %s199 = sand.u32 %s90, 1
        %s200 = sand.u32 %s90, 1
        %s201 = smul.addr %s200, 32
        %s202 = scalar_lea.vmem [#allocation3], %s201
        %v203 = vld [vmem:[%s1] sm:$0xff]
        %v204 = vld [vmem:[%s1 + $0x8] sm:$0x1]
        %v205 = vld [vmem:[%s0] sm:$0xff]
        %v206 = vld [vmem:[%s0 + $0x8] sm:$0x1]
        %v207 = vld [vmem:[%s183] sm:$0x1]
        %209 = vset.pattern.permute.xlu0 0
        %210 = vperm.xlu0 %209, %v205
        %v211 = vpop.permute.xlu0 %210
        %214 = vset.pattern.permute.xlu0 0
        %215 = vperm.xlu0 %214, %v206
        %v216 = vpop.permute.xlu0 %215
        %v219 = vlaneseq
        %v220 = vshrl.u32 %v219, 7
        %v221 = vsub.s32 0, %v220
        %v222 = vrot.slane %v207, %v221
        %v224 = vmul.f32 %v211, %v222
        %v225 = vmul.f32 %v216, %v222
        %227 = vset.pattern.permute.xlu0 0
        %228 = vperm.xlu0 %227, %v203
        %v229 = vpop.permute.xlu0 %228
        %232 = vset.pattern.permute.xlu0 0
        %233 = vperm.xlu0 %232, %v204
        %v234 = vpop.permute.xlu0 %233
        %v236 = vadd.f32 %v224, %v229
        %v237 = vadd.f32 %v225, %v234
        %238 = vst [vmem:[%s202] sm:$0xff] %v236
        %239 = vst [vmem:[%s202 + $0x8] sm:$0x1] %v237
        %v240 = vld [vmem:[%s0] sm:$0xff]
        %v241 = vld [vmem:[%s0 + $0x8] sm:$0x1]
        %s242 = scalar_lea.vmem %s183, 1 [#allocation2]
        %v243 = vld [vmem:[%s242] sm:$0x1]
        %245 = vset.pattern.permute.xlu0 0
        %246 = vperm.xlu0 %245, %v240
        %v247 = vpop.permute.xlu0 %246
        %250 = vset.pattern.permute.xlu0 0
        %251 = vperm.xlu0 %250, %v241
        %v252 = vpop.permute.xlu0 %251
        %v255 = vlaneseq
        %v256 = vshrl.u32 %v255, 7
        %v257 = vsub.s32 0, %v256
        %v258 = vrot.slane %v243, %v257
        %v260 = vmul.f32 %v247, %v258
        %v261 = vmul.f32 %v252, %v258
        %v262 = vadd.f32 %v260, %v229
        %v263 = vadd.f32 %v261, %v234
        %s264 = scalar_lea.vmem %s202, 16 [#allocation3]
        %265 = vst [vmem:[%s264] sm:$0xff] %v262
        %266 = vst [vmem:[%s264 + $0x8] sm:$0x1] %v263
        %s267 = sand.u32 %s90, 1
        %s268 = sand.u32 %s90, 1
        %s269 = smul.addr %s268, 32
        %s270 = scalar_lea.vmem [#allocation3], %s269
        // Predicated region
        $region67: #{tpu_custom_call.1} parent=61 // pred_check
          %p271 = pneg %p100
        $region68: #{tpu_custom_call.1} parent=61 // pred_check_branch
          %273 = sbr.rel (%p271) target = $region70
        $region69: #{tpu_custom_call.1} parent=61 // pred_region
          %s274 = smul.addr %s14, 8
          %s275 = scalar_lea.vmem %s3, %s274
          // Predicated region
          $region71: #{tpu_custom_call.1} parent=69 // pred_check
            _
          $region72: #{tpu_custom_call.1} parent=69 // pred_check_branch
            %277 = sbr.rel (0) target = $region74
          $region73: #{tpu_custom_call.1} parent=69 // pred_region
            // Predicated region
            $region75: #{tpu_custom_call.1} parent=73 // pred_check
              _
            $region76: #{tpu_custom_call.1} parent=73 // pred_check_branch
              %279 = sbr.rel (0) target = $region78
            $region77: #{tpu_custom_call.1} parent=73 // pred_region
              // Predicated region
              $region90: #{tpu_custom_call.1} parent=77 // pred_check
                _
              $region91: #{tpu_custom_call.1} parent=77 // pred_check_branch
                %301 = sbr.rel (0) target = $region93
              $region92: #{tpu_custom_call.1} parent=77 // pred_region
                loop: start=0, step=1, limit=1
                $region94: #{tpu_custom_call.1} parent=92 // loop_pre_header
                  _
                $region95: #{tpu_custom_call.1} parent=92 // loop_header
                  %s303 = sphi 0, %s307
                  %p304 = scmp.ge.s32.totalorder %s303, 1
                  %s308 = sphi %s270, %s270
                  %s309 = sphi %s275, %s275
                $region96: #{tpu_custom_call.1} parent=92 // loop_header_branch
                  %306 = sbr.rel (%p304) target = $region100
                $region97: #{tpu_custom_call.1} parent=92 // loop_body
                  %v310 = vld [vmem:[%s308] sm:$0xff]
                  %311 = vst [vmem:[%s309] sm:$0xff] %v310
                  %v312 = vld [vmem:[%s308 + $0x8] sm:$0xff]
                  %313 = vst [vmem:[%s309 + $0x10] sm:$0xff] %v312
                  %v314 = vld [vmem:[%s308 + $0x10] sm:$0xff]
                  %315 = vst [vmem:[%s309 + $0x20] sm:$0xff] %v314
                  %v316 = vld [vmem:[%s308 + $0x18] sm:$0xff]
                  %317 = vst [vmem:[%s309 + $0x30] sm:$0xff] %v316
                $region98: #{tpu_custom_call.1} parent=92 // loop_footer
                  %s307 = sadd.s32 1, %s303
                $region99: #{tpu_custom_call.1} parent=92 // loop_footer_branch
                  %302 = sbr.rel target = $region95
                $region100: #{tpu_custom_call.1} parent=92 // loop_exit
                  _
              $region93: #{tpu_custom_call.1} parent=77 // pred_fallthru
                _
              // Predicated region
              $region101: #{tpu_custom_call.1} parent=77 // pred_check
                _
              $region102: #{tpu_custom_call.1} parent=77 // pred_check_branch
                %319 = sbr.rel target = $region104
              $region103: #{tpu_custom_call.1} parent=77 // pred_region
                _
              $region104: #{tpu_custom_call.1} parent=77 // pred_fallthru
                _
            $region78: #{tpu_custom_call.1} parent=73 // pred_fallthru
              _
            // Predicated region
            $region79: #{tpu_custom_call.1} parent=73 // pred_check
              _
            $region80: #{tpu_custom_call.1} parent=73 // pred_check_branch
              %281 = sbr.rel target = $region82
            $region81: #{tpu_custom_call.1} parent=73 // pred_region
              %s283 = ssub.s32 256, 1
              loop: start=0, step=1, limit=1
              $region83: #{tpu_custom_call.1} parent=81 // loop_pre_header
                _
              $region84: #{tpu_custom_call.1} parent=81 // loop_header
                %s285 = sphi 0, %s289
                %p286 = scmp.ge.s32.totalorder %s285, 1
                %s290 = sphi %s270, %s270
                %s291 = sphi %s275, %s275
              $region85: #{tpu_custom_call.1} parent=81 // loop_header_branch
                %288 = sbr.rel (%p286) target = $region89
              $region86: #{tpu_custom_call.1} parent=81 // loop_body
                %v292 = vld [vmem:[%s290] sm:%s283]
                %293 = vst [vmem:[%s291] sm:%s283] %v292
                %v294 = vld [vmem:[%s290 + $0x8] sm:%s283]
                %295 = vst [vmem:[%s291 + $0x10] sm:%s283] %v294
                %v296 = vld [vmem:[%s290 + $0x10] sm:%s283]
                %297 = vst [vmem:[%s291 + $0x20] sm:%s283] %v296
                %v298 = vld [vmem:[%s290 + $0x18] sm:%s283]
                %299 = vst [vmem:[%s291 + $0x30] sm:%s283] %v298
              $region87: #{tpu_custom_call.1} parent=81 // loop_footer
                %s289 = sadd.s32 1, %s285
              $region88: #{tpu_custom_call.1} parent=81 // loop_footer_branch
                %284 = sbr.rel target = $region84
              $region89: #{tpu_custom_call.1} parent=81 // loop_exit
                _
            $region82: #{tpu_custom_call.1} parent=73 // pred_fallthru
              _
          $region74: #{tpu_custom_call.1} parent=69 // pred_fallthru
            _
          %320 = vnop
        $region70: #{tpu_custom_call.1} parent=61 // pred_fallthru
          _
      $region62: #{tpu_custom_call.1} parent=5 // pred_fallthru
        _
      %p321 = scmp.le.s32.totalorder 2, %s9
      // Predicated region
      $region105: #{tpu_custom_call.1} parent=5 // pred_check
        %p322 = pneg %p321
      $region106: #{tpu_custom_call.1} parent=5 // pred_check_branch
        %324 = sbr.rel (%p322) target = $region108
      $region107: #{tpu_custom_call.1} parent=5 // pred_region
        %s325 = ssub.s32 %s9, 2
        // Predicated region
        $region109: #{tpu_custom_call.1} parent=107 // pred_check
          %p326 = pneg %p106
        $region110: #{tpu_custom_call.1} parent=107 // pred_check_branch
          %328 = sbr.rel (%p326) target = $region112
        $region111: #{tpu_custom_call.1} parent=107 // pred_region
          %s329 = sand.u32 %s91, 1
          %s330 = sand.u32 %s91, 1
          %s331 = smul.addr %s330, 32
          %s332 = scalar_lea.vmem [#allocation3], %s331
        $region112: #{tpu_custom_call.1} parent=107 // pred_fallthru
          _
      $region108: #{tpu_custom_call.1} parent=5 // pred_fallthru
        _
    $region6: #{tpu_custom_call.1} parent=1 // loop_footer
      %s13 = sadd.s32 1, %s9
    $region7: #{tpu_custom_call.1} parent=1 // loop_footer_branch
      %8 = sbr.rel target = $region3
    $region8: #{tpu_custom_call.1} parent=1 // loop_exit
      _

</llo_original>
